<compile_context>
chip_gen: v7x
topology: tpu7x:2x2x1
jax: 0.10.0
libtpu: 0.0.40
codegen_flags: <defaults>
</compile_context>

<pallas_src>
import jax
import jax.numpy as jnp
from jax import lax
from jax.experimental import pallas as pl
from jax.experimental.pallas import tpu as pltpu

LANES = 128        # lane width (last dim of every block)
SUBROWS = 8        # sublanes per f32 vreg
SLAB = 512         # rows reduced per inner-loop iteration (256 KiB f32 slab)
TM_MAX = 8192      # cap on rows per grid step (8 MiB/step for an f32 pair)


def _tpu_vmem_bytes():
    """Physical VMEM per TensorCore; conservative fallback if unknown."""
    try:
        info = pltpu.get_tpu_info()
        v = getattr(info, "vmem_capacity_bytes", None)
        if v:
            return int(v)
    except Exception:
        pass
    return 64 << 20   # v7x is the smallest current generation


def _tpu_num_tensorcores():
    """TensorCores usable by one pallas_call (megacore / v7x split)."""
    try:
        info = pltpu.get_tpu_info()
        for attr in ("num_cores", "core_count", "num_tensorcores",
                     "tensorcores_per_chip", "cores_per_chip"):
            v = getattr(info, attr, None)
            if isinstance(v, int) and v > 0:
                return v
    except Exception:
        pass
    try:
        kind = jax.devices()[0].device_kind.lower()
        # v5e / v6e are single-TensorCore chips.
        if any(s in kind for s in ("v5e", "v5 lite", "v5litepod",
                                   "v6e", "v6 lite")):
            return 1
    except Exception:
        pass
    # Megacore / v7x / unknown: a size-2 "parallel" axis is harmless
    # (it just runs sequentially) on single-core chips, so default to 2.
    return 2


def _vreg_fold(v2d):
    """Fold an (r, 128) value (r a multiple of 8) into one (8, 128) vreg via a
    pairwise tree of vector adds — pure VPU, no reshape, log-depth chain."""
    r = v2d.shape[0]
    parts = [v2d[s:s + SUBROWS, :] for s in range(0, r, SUBROWS)]
    while len(parts) > 1:
        nxt = [parts[k] + parts[k + 1] for k in range(0, len(parts) - 1, 2)]
        if len(parts) % 2:
            nxt.append(parts[-1])
        parts = nxt
    return parts[0]


def _make_sdc_kernel(rows, tm, needs_mask, full_blocks):
    """rows / tm / needs_mask / full_blocks are static Python values."""
    n_full = tm // SLAB
    rem = tm - n_full * SLAB          # multiple of SUBROWS by construction

    def kernel(i_ref, t_ref, out_ref):
        core = pl.program_id(0)
        step = pl.program_id(1)

        @pl.when(step == 0)
        def _():
            out_ref[...] = jnp.zeros_like(out_ref)

        # Logical (un-clamped) block id; matches the in_map's i*steps + j
        # because the grid's second extent IS `steps`.
        block_id = core * pl.num_programs(1) + step

        def slab_reduce(row_off, nrows, masked, carry):
            inter_v, union_v = carry
            i = i_ref[pl.ds(row_off, nrows), :].astype(jnp.float32)
            t = t_ref[pl.ds(row_off, nrows), :].astype(jnp.float32)
            if masked:
                # Zero rows beyond the true extent (partial last block and
                # clamped duplicate blocks).  jnp.where so undefined edge
                # padding (possibly NaN) cannot leak into the sums.
                gids = (block_id * tm + row_off
                        + lax.broadcasted_iota(jnp.int32, (nrows, LANES), 0))
                valid = gids < rows
                i = jnp.where(valid, i, 0.0)
                t = jnp.where(valid, t, 0.0)
            inter_v = inter_v + _vreg_fold(i * t)
            union_v = union_v + _vreg_fold(i + t)
            return inter_v, union_v

        def block_reduce(masked):
            zero = jnp.zeros((SUBROWS, LANES), jnp.float32)
            carry = (zero, zero)
            if n_full > 0:
                def body(s, c):
                    off = pl.multiple_of(s * SLAB, SLAB)
                    return slab_reduce(off, SLAB, masked, c)
                carry = lax.fori_loop(0, n_full, body, carry)
            if rem > 0:
                carry = slab_reduce(n_full * SLAB, rem, masked, carry)
            inter_v, union_v = carry
            # Once per grid step: tiny (8,128) accumulate into the resident
            # per-core output block (written back to HBM only at the end).
            out_ref[0, 0, :, :] += inter_v
            out_ref[0, 1, :, :] += union_v

        if needs_mask:
            hot = block_id < full_blocks

            @pl.when(hot)
            def _():
                block_reduce(False)

            @pl.when(jnp.logical_not(hot))
            def _():
                block_reduce(True)
        else:
            block_reduce(False)

    return kernel


def sdc_loss(inputs, targets, smooth=1.0):
    """Soft Dice loss: 1 - (2*sum(i*t) + s) / (sum(i) + sum(t) + s)."""
    assert inputs.shape == targets.shape
    n = int(inputs.size)

    iflat = inputs.reshape(-1)
    tflat = targets.reshape(-1)

    i_item = jnp.dtype(inputs.dtype).itemsize
    t_item = jnp.dtype(targets.dtype).itemsize
    # Row (sublane) alignment so blocks satisfy the min tile of the narrowest
    # streamed dtype (f32: 8, bf16: 16, int8/bool: 32).
    align = max(SUBROWS, 32 // max(1, min(i_item, t_item)))

    rows = n // LANES
    tail = n - rows * LANES

    if rows < align:
        # Too small for even one aligned lane-row block; pure-JAX fallback.
        i32 = iflat.astype(jnp.float32)
        t32 = tflat.astype(jnp.float32)
        intersection = jnp.sum(i32 * t32)
        union = jnp.sum(i32) + jnp.sum(t32)
        return 1.0 - (2.0 * intersection + smooth) / (union + smooth)

    # Lane tail (< 128 elements) is reduced in the wrapper — negligible work.
    tail_inter = jnp.float32(0.0)
    tail_union = jnp.float32(0.0)
    if tail:
        # TODO(synk): when n % 128 != 0 this prefix slice feeding pallas_call
        # may materialize an HBM copy; typical NCHW sizes take the copy-free
        # branch below.
        it = iflat[rows * LANES:].astype(jnp.float32)
        tt = tflat[rows * LANES:].astype(jnp.float32)
        tail_inter = jnp.sum(it * tt)
        tail_union = jnp.sum(it) + jnp.sum(tt)
        i2d = iflat[: rows * LANES].reshape(rows, LANES)
        t2d = tflat[: rows * LANES].reshape(rows, LANES)
    else:
        i2d = iflat.reshape(rows, LANES)   # free reshape, no copy / pad
        t2d = tflat.reshape(rows, LANES)

    # ---- Generation-aware tile sizing -------------------------------------
    # Budget: 2 inputs x 2 pipeline buffers x tm x 128 x itemsize, with ~25%
    # of physical VMEM left as headroom (accumulators are now vreg-sized).
    vmem_cap = _tpu_vmem_bytes()
    budget = (3 * vmem_cap) // 4
    bytes_per_row = 2 * LANES * (i_item + t_item)      # x2 pipeline buffers
    tm_cap = min(TM_MAX, max(align, budget // bytes_per_row))
    tm_cap = max(align, (tm_cap // align) * align)

    if rows <= tm_cap:
        tm = rows if rows % align == 0 else (rows // align) * align
    else:
        tm = tm_cap

    total_blocks = (rows + tm - 1) // tm
    ncores = _tpu_num_tensorcores()
    ncores = ncores if total_blocks >= ncores else 1
    steps = (total_blocks + ncores - 1) // ncores
    needs_mask = (ncores * steps * tm) != rows
    full_blocks = rows // tm            # blocks guaranteed fully in-bounds
    last_block = total_blocks - 1

    def in_map(i, j):
        # Clamp so no block is requested entirely outside the array; clamped
        # duplicate blocks are fully masked away inside the kernel.
        return (jnp.minimum(i * steps + j, last_block), 0)

    kernel = _make_sdc_kernel(rows, tm, needs_mask, full_blocks)

    block_bytes = tm * LANES * (i_item + t_item)
    vmem_limit = int(min(max(32 << 20, 2 * block_bytes + (8 << 20)),
                         vmem_cap - (8 << 20)))
    vmem_limit = max(vmem_limit, 2 * block_bytes + (2 << 20))

    partials = pl.pallas_call(
        kernel,
        out_shape=jax.ShapeDtypeStruct((ncores, 2, SUBROWS, LANES), jnp.float32),
        grid=(ncores, steps),
        in_specs=[
            pl.BlockSpec((tm, LANES), in_map),
            pl.BlockSpec((tm, LANES), in_map),
        ],
        out_specs=pl.BlockSpec((1, 2, SUBROWS, LANES), lambda i, j: (i, 0, 0, 0)),
        compiler_params=pltpu.CompilerParams(
            dimension_semantics=("parallel", "arbitrary"),
            vmem_limit_bytes=vmem_limit,
        ),
        cost_estimate=pl.CostEstimate(
            flops=4 * rows * LANES,
            transcendentals=0,
            bytes_accessed=int(i2d.nbytes) + int(t2d.nbytes)
                           + ncores * 2 * SUBROWS * LANES * 4,
        ),
    )(i2d, t2d)

    intersection = jnp.sum(partials[:, 0]) + tail_inter
    union = jnp.sum(partials[:, 1]) + tail_union
    return 1.0 - (2.0 * intersection + smooth) / (union + smooth)


def sdc_loss_ref(inputs, targets, smooth=1.0):
    iflat = inputs.reshape(-1).astype(jnp.float32)
    tflat = targets.reshape(-1).astype(jnp.float32)
    intersection = jnp.sum(iflat * tflat)
    union = jnp.sum(tflat) + jnp.sum(iflat)
    return 1.0 - (2.0 * intersection + smooth) / (union + smooth)


if __name__ == "__main__":
    key = jax.random.PRNGKey(0)
    k1, k2 = jax.random.split(key)
    # NCHW sigmoid probabilities vs. binary targets, as the PyTorch module sees.
    inputs = jax.nn.sigmoid(jax.random.normal(k1, (2, 4, 16, 16), jnp.float32))
    targets = (jax.random.uniform(k2, (2, 4, 16, 16)) > 0.5).astype(jnp.float32)

    out = sdc_loss(inputs, targets)
    jax.block_until_ready(out)

    ref = sdc_loss_ref(inputs, targets)
    assert jnp.allclose(out, ref, atol=1e-5, rtol=1e-5), (out, ref)
    print("KERNEL_OK")
</pallas_src>

<mosaic_0001>
module attributes {stable_mosaic.version = 11 : i64} {
  func.func @kernel(%arg0: i32, %arg1: i32, %arg2: memref<16x128xf32, #tpu.memory_space<vmem>>, %arg3: memref<16x128xf32, #tpu.memory_space<vmem>>, %arg4: memref<1x2x8x128xf32, #tpu.memory_space<vmem>>) attributes {dimension_semantics = [#tpu.dimension_semantics<parallel>, #tpu.dimension_semantics<arbitrary>], iteration_bounds = array<i64: 1, 1>, scalar_prefetch = 0 : i64, scratch_operands = 0 : i64, tpu.core_type = #tpu.core_type<tc>, window_params = [{transform_indices = @transform_0, window_bounds = array<i64: 16, 128>}, {transform_indices = @transform_1, window_bounds = array<i64: 16, 128>}, {transform_indices = @transform_2, window_bounds = array<i64: 1, 2, 8, 128>}]} {
    %c0_i32 = arith.constant 0 : i32
    %0 = arith.cmpi eq, %arg1, %c0_i32 : i32
    %1 = arith.extui %0 : i1 to i32
    %c0_i32_0 = arith.constant 0 : i32
    %2 = arith.cmpi ne, %1, %c0_i32_0 : i32
    scf.if %2 {
      %cst_19 = arith.constant 0.000000e+00 : f32
      %28 = vector.broadcast %cst_19 : f32 to vector<1x2x8x128xf32>
      %c0_20 = arith.constant 0 : index
      %c0_21 = arith.constant 0 : index
      %c0_22 = arith.constant 0 : index
      %c0_23 = arith.constant 0 : index
      %29 = vector.load %arg4[%c0_20, %c0_21, %c0_22, %c0_23] : memref<1x2x8x128xf32, #tpu.memory_space<vmem>>, vector<1x2x8x128xf32>
      tpu.vector_store %arg4[%c0_20, %c0_21, %c0_22, %c0_23], %28 {strides = array<i32>} : memref<1x2x8x128xf32, #tpu.memory_space<vmem>>, vector<1x2x8x128xf32>,
    } else {
    }
    %cst = arith.constant 0.000000e+00 : f32
    %3 = vector.broadcast %cst : f32 to vector<8x128xf32>
    %c0 = arith.constant 0 : index
    %c0_1 = arith.constant 0 : index
    %4 = vector.load %arg2[%c0, %c0_1] : memref<16x128xf32, #tpu.memory_space<vmem>>, vector<16x128xf32>
    %c0_2 = arith.constant 0 : index
    %c0_3 = arith.constant 0 : index
    %5 = vector.load %arg3[%c0_2, %c0_3] : memref<16x128xf32, #tpu.memory_space<vmem>>, vector<16x128xf32>
    %6 = arith.mulf %4, %5 : vector<16x128xf32>
    %7 = vector.extract_strided_slice %6 {offsets = [0, 0], sizes = [8, 128], strides = [1, 1]} : vector<16x128xf32> to vector<8x128xf32>
    %8 = vector.extract_strided_slice %6 {offsets = [8, 0], sizes = [8, 128], strides = [1, 1]} : vector<16x128xf32> to vector<8x128xf32>
    %9 = arith.addf %7, %8 : vector<8x128xf32>
    %10 = arith.addf %3, %9 : vector<8x128xf32>
    %11 = arith.addf %4, %5 : vector<16x128xf32>
    %12 = vector.extract_strided_slice %11 {offsets = [0, 0], sizes = [8, 128], strides = [1, 1]} : vector<16x128xf32> to vector<8x128xf32>
    %13 = vector.extract_strided_slice %11 {offsets = [8, 0], sizes = [8, 128], strides = [1, 1]} : vector<16x128xf32> to vector<8x128xf32>
    %14 = arith.addf %12, %13 : vector<8x128xf32>
    %15 = arith.addf %3, %14 : vector<8x128xf32>
    %c0_4 = arith.constant 0 : index
    %c0_5 = arith.constant 0 : index
    %c0_6 = arith.constant 0 : index
    %c0_7 = arith.constant 0 : index
    %16 = vector.load %arg4[%c0_4, %c0_5, %c0_6, %c0_7] : memref<1x2x8x128xf32, #tpu.memory_space<vmem>>, vector<1x1x8x128xf32>
    %17 = vector.shape_cast %16 : vector<1x1x8x128xf32> to vector<8x128xf32>
    %18 = arith.addf %17, %10 : vector<8x128xf32>
    %c0_8 = arith.constant 0 : index
    %c0_9 = arith.constant 0 : index
    %c0_10 = arith.constant 0 : index
    %c0_11 = arith.constant 0 : index
    %19 = vector.load %arg4[%c0_8, %c0_9, %c0_10, %c0_11] : memref<1x2x8x128xf32, #tpu.memory_space<vmem>>, vector<1x1x8x128xf32>
    %20 = vector.shape_cast %19 : vector<1x1x8x128xf32> to vector<8x128xf32>
    %21 = vector.shape_cast %18 : vector<8x128xf32> to vector<1x1x8x128xf32>
    tpu.vector_store %arg4[%c0_8, %c0_9, %c0_10, %c0_11], %21 {strides = array<i32>} : memref<1x2x8x128xf32, #tpu.memory_space<vmem>>, vector<1x1x8x128xf32>,
    %c0_12 = arith.constant 0 : index
    %c1 = arith.constant 1 : index
    %c0_13 = arith.constant 0 : index
    %c0_14 = arith.constant 0 : index
    %22 = vector.load %arg4[%c0_12, %c1, %c0_13, %c0_14] : memref<1x2x8x128xf32, #tpu.memory_space<vmem>>, vector<1x1x8x128xf32>
    %23 = vector.shape_cast %22 : vector<1x1x8x128xf32> to vector<8x128xf32>
    %24 = arith.addf %23, %15 : vector<8x128xf32>
    %c0_15 = arith.constant 0 : index
    %c1_16 = arith.constant 1 : index
    %c0_17 = arith.constant 0 : index
    %c0_18 = arith.constant 0 : index
    %25 = vector.load %arg4[%c0_15, %c1_16, %c0_17, %c0_18] : memref<1x2x8x128xf32, #tpu.memory_space<vmem>>, vector<1x1x8x128xf32>
    %26 = vector.shape_cast %25 : vector<1x1x8x128xf32> to vector<8x128xf32>
    %27 = vector.shape_cast %24 : vector<8x128xf32> to vector<1x1x8x128xf32>
    tpu.vector_store %arg4[%c0_15, %c1_16, %c0_17, %c0_18], %27 {strides = array<i32>} : memref<1x2x8x128xf32, #tpu.memory_space<vmem>>, vector<1x1x8x128xf32>,
    return
  }
  func.func @transform_0(%arg0: i32, %arg1: i32) -> (i32, i32) {
    %c1_i32 = arith.constant 1 : i32
    %0 = arith.muli %arg0, %c1_i32 : i32
    %1 = arith.addi %0, %arg1 : i32
    %c0_i32 = arith.constant 0 : i32
    %2 = arith.minsi %1, %c0_i32 : i32
    %c0_i32_0 = arith.constant 0 : i32
    %c0_i32_1 = arith.constant 0 : i32
    return %2, %c0_i32_0 : i32, i32
  }
  func.func @transform_1(%arg0: i32, %arg1: i32) -> (i32, i32) {
    %c1_i32 = arith.constant 1 : i32
    %0 = arith.muli %arg0, %c1_i32 : i32
    %1 = arith.addi %0, %arg1 : i32
    %c0_i32 = arith.constant 0 : i32
    %2 = arith.minsi %1, %c0_i32 : i32
    %c0_i32_0 = arith.constant 0 : i32
    %c0_i32_1 = arith.constant 0 : i32
    return %2, %c0_i32_0 : i32, i32
  }
  func.func @transform_2(%arg0: i32, %arg1: i32) -> (i32, i32, i32, i32) {
    %c0_i32 = arith.constant 0 : i32
    %c0_i32_0 = arith.constant 0 : i32
    %c0_i32_1 = arith.constant 0 : i32
    %c0_i32_2 = arith.constant 0 : i32
    return %arg0, %c0_i32, %c0_i32_0, %c0_i32_1 : i32, i32, i32, i32
  }
}

</mosaic_0001>

<llo_original>
// kernel: tpu_custom_call.1
$region0: #{tpu_custom_call.1}
  #allocation0 [shape = 'u32[]', space=smem, size = 0x4, offset = 0x4, fixed_abs, tag = 'smem constant byte address 0x4 - core index']
  #allocation1 [shape = 'u32[144,128]{1,0:T(1,128)}', space=vmem, size = 0x12000, scoped, tag = 'internal scratch']
  %s0 = inlined_call_operand.hbm [shape: f32[16,128], index: 0, kind: input, shape index: {}]
  %s1 = inlined_call_operand.hbm [shape: f32[16,128], index: 1, kind: input, shape index: {}]
  %s2 = inlined_call_operand.hbm [shape: f32[1,2,8,128], index: 2, kind: output, shape index: {}]
  %s3 = sld [smem:[#allocation0]]
  $region30: #{tpu_custom_call.1} parent=0
    _
  %s5 = ssub.s32 1, %s3
  %s6 = scalar_select 0, %s5, %s3
  $region1: #{tpu_custom_call.1} parent=0
    #allocation2 [shape = 'u8[8192]{0}', space=vmem, size = 0x2000, scoped, tag = 'input window, operand 0, single buffered']
    #allocation3 [shape = 's32[1]{0}', space=sflag, size = 0x4, scoped, tag = 'scoped memory for tpu_custom_call.1']
    #allocation4 [shape = 's32[1]{0}', space=sflag, size = 0x4, scoped, tag = 'scoped memory for tpu_custom_call.1']
    #allocation5 [shape = 'u8[8192]{0}', space=vmem, size = 0x2000, scoped, tag = 'input window, operand 1, single buffered']
    #allocation6 [shape = 's32[1]{0}', space=sflag, size = 0x4, scoped, tag = 'scoped memory for tpu_custom_call.1']
    #allocation7 [shape = 'u8[8192]{0}', space=vmem, size = 0x2000, scoped, tag = 'output window, operand 0, single buffered']
    %7 = vsyncpa [#allocation3], 0
    %8 = vsyncpa [#allocation6], 0
    %9 = vsyncpa [#allocation4], 0
    // Predicated region
    $region2: #{tpu_custom_call.1} parent=1 // pred_check
      _
    $region3: #{tpu_custom_call.1} parent=1 // pred_check_branch
      %11 = sbr.rel (0) target = $region5
    $region4: #{tpu_custom_call.1} parent=1 // pred_region
      %s12 = sadd.s32 0, 0
      %p13 = scmp.lt.s32.totalorder %s12, 0
      %s14 = scalar_select %p13, %s12, 0
      %s15 = smul.u32 2, %s14
      %s17 = ssub.s32 256, 256
      %18 = vsyncadd [#allocation3], %s17
      %s19 = smul.addr %s15, 128
      %s20 = scalar_lea.hbm %s0, %s19
      %s21 = sshll.u32 [#allocation2], 4
      %s22 = int_to_ptr.vmem [resolvable:$true] %s21
      %27 = dma.hbm_to_vmem [thread:$0]  %s20, 256, %s22, [#allocation3], 128, 128, 8
    $region5: #{tpu_custom_call.1} parent=1 // pred_fallthru
      _
    // Predicated region
    $region6: #{tpu_custom_call.1} parent=1 // pred_check
      _
    $region7: #{tpu_custom_call.1} parent=1 // pred_check_branch
      %29 = sbr.rel (0) target = $region9
    $region8: #{tpu_custom_call.1} parent=1 // pred_region
      %s30 = sadd.s32 0, 0
      %p31 = scmp.lt.s32.totalorder %s30, 0
      %s32 = scalar_select %p31, %s30, 0
      %s33 = smul.u32 2, %s32
      %s35 = ssub.s32 256, 256
      %36 = vsyncadd [#allocation6], %s35
      %s37 = smul.addr %s33, 128
      %s38 = scalar_lea.hbm %s1, %s37
      %s39 = sshll.u32 [#allocation5], 4
      %s40 = int_to_ptr.vmem [resolvable:$true] %s39
      %45 = dma.hbm_to_vmem [thread:$0]  %s38, 256, %s40, [#allocation6], 128, 128, 8
    $region9: #{tpu_custom_call.1} parent=1 // pred_fallthru
      _
    // Predicated region
    $region10: #{tpu_custom_call.1} parent=1 // pred_check
      _
    $region11: #{tpu_custom_call.1} parent=1 // pred_check_branch
      %47 = sbr.rel (0) target = $region13
    $region12: #{tpu_custom_call.1} parent=1 // pred_region
      %48 = dma.done [#allocation3], 256
    $region13: #{tpu_custom_call.1} parent=1 // pred_fallthru
      _
    // Predicated region
    $region14: #{tpu_custom_call.1} parent=1 // pred_check
      _
    $region15: #{tpu_custom_call.1} parent=1 // pred_check_branch
      %50 = sbr.rel (0) target = $region17
    $region16: #{tpu_custom_call.1} parent=1 // pred_region
      %51 = dma.done [#allocation6], 256
    $region17: #{tpu_custom_call.1} parent=1 // pred_fallthru
      _
    %s52 = sadd.s32 0, 0
    %p53 = scmp.lt.s32.totalorder %s52, 0
    %s54 = scalar_select %p53, %s52, 0
    %s55 = smul.u32 2, %s54
    %s56 = sadd.s32 0, 0
    %p57 = scmp.lt.s32.totalorder %s56, 0
    %s58 = scalar_select %p57, %s56, 0
    %s59 = smul.u32 2, %s58
    %p60 = scmp.eq.s32.totalorder 0, 0
    // Predicated region
    $region18: #{tpu_custom_call.1} parent=1 // pred_check
      %p61 = pneg %p60
    $region19: #{tpu_custom_call.1} parent=1 // pred_check_branch
      %63 = sbr.rel (%p61) target = $region21
    $region20: #{tpu_custom_call.1} parent=1 // pred_region
      %64 = vst [vmem:[#allocation7] sm:$0xff] 0.0
      %65 = vst [vmem:[#allocation7 + $0x8] sm:$0xff] 0.0
    $region21: #{tpu_custom_call.1} parent=1 // pred_fallthru
      _
    %v66 = vld [vmem:[#allocation2] sm:$0xff]
    %v67 = vld [vmem:[#allocation2 + $0x8] sm:$0xff]
    %v68 = vld [vmem:[#allocation5] sm:$0xff]
    %v69 = vld [vmem:[#allocation5 + $0x8] sm:$0xff]
    %v70 = vmul.f32 %v66, %v68
    %v71 = vmul.f32 %v67, %v69
    %v72 = vadd.f32 %v70, %v71
    %v73 = vadd.f32 %v72, 0.0
    %v74 = vadd.f32 %v66, %v68
    %v75 = vadd.f32 %v67, %v69
    %v76 = vadd.f32 %v74, %v75
    %v77 = vadd.f32 %v76, 0.0
    %v78 = vld [vmem:[#allocation7] sm:$0xff]
    %v79 = vadd.f32 %v78, %v73
    %80 = vst [vmem:[#allocation7] sm:$0xff] %v79
    %s81 = scalar_lea.vmem [#allocation7], 8
    %v82 = vld [vmem:[%s81] sm:$0xff]
    %v83 = vadd.f32 %v82, %v77
    %84 = vst [vmem:[%s81] sm:$0xff] %v83
    // Predicated region
    $region22: #{tpu_custom_call.1} parent=1 // pred_check
      _
    $region23: #{tpu_custom_call.1} parent=1 // pred_check_branch
      %86 = sbr.rel (0) target = $region25
    $region24: #{tpu_custom_call.1} parent=1 // pred_region
      %s88 = ssub.s32 256, 256
      %89 = vsyncadd [#allocation4], %s88
      %s90 = sshll.u32 [#allocation7], 4
      %s91 = int_to_ptr.vmem [resolvable:$true] %s90
      %96 = dma.vmem_to_hbm [thread:$0]  %s91, 256, %s2, [#allocation4], 128, 128, 8
    $region25: #{tpu_custom_call.1} parent=1 // pred_fallthru
      _
    // Predicated region
    $region26: #{tpu_custom_call.1} parent=1 // pred_check
      _
    $region27: #{tpu_custom_call.1} parent=1 // pred_check_branch
      %98 = sbr.rel (0) target = $region29
    $region28: #{tpu_custom_call.1} parent=1 // pred_region
      %99 = dma.done [#allocation4], 256
    $region29: #{tpu_custom_call.1} parent=1 // pred_fallthru
      _
    %100 = vsyncpa [#allocation3], 1
    %101 = vsyncpa [#allocation6], 1
    %102 = vsyncpa [#allocation4], 1

</llo_original>
